<compile_context>
chip_gen: v7x
topology: tpu7x:2x2x1
jax: 0.10.0
libtpu: 0.0.40
codegen_flags: <defaults>
</compile_context>

<pallas_src>
import functools

import jax
import jax.numpy as jnp
import numpy as np
from jax import lax
from jax.experimental import pallas as pl
from jax.experimental.pallas import tpu as pltpu

_LANE = 128
_SUBLANE = 8


def _cdiv(a, b):
    return -(-a // b)


# ---------------------------------------------------------------------------
# Packed kernel: x viewed as (B, C, R, 128); block = (1, C, S, 128).
# Grid = (nsplit, B, row_tiles): both leading axes "parallel", reduction last.
# ---------------------------------------------------------------------------
def _dice_stats_packed_kernel(x_ref, y_ref, tp_ref, fp_ref, fn_ref,
                              acc_tp, acc_x, acc_cnt, *,
                              rows_total, need_mask):
    t = pl.program_id(2)

    @pl.when(t == 0)
    def _init():
        acc_tp[...] = jnp.zeros_like(acc_tp)
        acc_x[...] = jnp.zeros_like(acc_x)
        acc_cnt[...] = jnp.zeros_like(acc_cnt)

    lbl = y_ref[0, 0].astype(jnp.int32)                    # (S, 128)
    S, L = lbl.shape
    C = x_ref.shape[1]
    G = S // _SUBLANE
    lbl_g = lbl.reshape(G, _SUBLANE, L)                    # tile-aligned view

    valid = None
    if need_mask:
        # Global row index of every element; rows >= rows_total are garbage
        # (partial last block or overhang block of the 2-way split).
        block_row = pl.program_id(0) * pl.num_programs(2) + t
        row = lax.broadcasted_iota(jnp.int32, (S, L), 0).reshape(G, _SUBLANE, L)
        valid = (row + block_row * S) < rows_total         # (G, 8, L) bool

    for c in range(C):                                     # C is small & static
        xc = x_ref[0, c].astype(jnp.float32).reshape(G, _SUBLANE, L)
        sel = lbl_g == c
        if need_mask:
            sel = jnp.logical_and(sel, valid)
            xc = jnp.where(valid, xc, 0.0)
        # Whole-vreg-group partial sums: pure VALU adds, (G,8,128) -> (8,128).
        acc_tp[c] += jnp.where(sel, xc, 0.0).sum(axis=0)
        acc_x[c] += xc.sum(axis=0)
        acc_cnt[c] += sel.astype(jnp.float32).sum(axis=0)

    @pl.when(t == pl.num_programs(2) - 1)
    def _finalize():
        # Single deferred cross-lane / cross-sublane reduce.
        tp = jnp.sum(jnp.sum(acc_tp[...], axis=2), axis=1, keepdims=True)   # (C,1)
        sx = jnp.sum(jnp.sum(acc_x[...], axis=2), axis=1, keepdims=True)
        cnt = jnp.sum(jnp.sum(acc_cnt[...], axis=2), axis=1, keepdims=True)
        tp_ref[0, 0] = tp
        fp_ref[0, 0] = sx - tp          # sum(x*(1-onehot)) == sum_x - tp
        fn_ref[0, 0] = cnt - tp         # sum((1-x)*onehot)  == cnt   - tp


def _dice_stats_packed(x4, y4, target_block_bytes):
    B, C, R, L = x4.shape
    xbytes = jnp.dtype(x4.dtype).itemsize
    ybytes = jnp.dtype(y4.dtype).itemsize

    # Rows per block: multiple of 32 (covers f32/bf16 x and int8 label tiling),
    # sized for ~target_block_bytes of x per step, capped so the double-
    # buffered working set stays well under the v7x scoped-VMEM default.
    s = target_block_bytes // (C * L * xbytes)
    s = min(s, R)
    s = max(32, (s // 32) * 32)
    budget = 12 * 1024 * 1024
    while s > 32 and 2 * s * L * (C * xbytes + ybytes) > budget:
        s -= 32
    S = int(s)

    nt = _cdiv(R, S)
    nsplit = 2 if (B == 1 and nt >= 2) else 1      # keep both v7x TCs busy
    tps = _cdiv(nt, nsplit)
    need_mask = (nsplit * tps * S) != R

    def row_block(split, t):
        # Clamp overhang blocks (odd nt with nsplit=2) to an in-bounds DMA;
        # the kernel's row mask zeroes their contribution.
        return jnp.minimum(split * tps + t, nt - 1)

    out_sd = jax.ShapeDtypeStruct((nsplit, B, C, 1), jnp.float32)
    stat_spec = pl.BlockSpec((1, 1, C, 1), lambda s_, b, t: (s_, b, 0, 0))

    kernel = functools.partial(_dice_stats_packed_kernel,
                               rows_total=R, need_mask=need_mask)
    tp, fp, fn = pl.pallas_call(
        kernel,
        out_shape=(out_sd, out_sd, out_sd),
        grid=(nsplit, B, tps),
        in_specs=[
            pl.BlockSpec((1, C, S, L), lambda s_, b, t: (b, 0, row_block(s_, t), 0)),
            pl.BlockSpec((1, 1, S, L), lambda s_, b, t: (b, 0, row_block(s_, t), 0)),
        ],
        out_specs=(stat_spec, stat_spec, stat_spec),
        scratch_shapes=[pltpu.VMEM((C, _SUBLANE, L), jnp.float32)] * 3,
        compiler_params=pltpu.CompilerParams(
            dimension_semantics=("parallel", "parallel", "arbitrary"),
            vmem_limit_bytes=32 * 1024 * 1024),
    )(x4, y4)
    # Sum the (possibly 2-way split) partial stats in the glue -> (B, C).
    return tp.sum(axis=0)[..., 0], fp.sum(axis=0)[..., 0], fn.sum(axis=0)[..., 0]


# ---------------------------------------------------------------------------
# Flat fallback kernel (rare path: HW not packable into 128-lane rows).
# Same structure as the proven original, but pad-free (lane mask) and with
# native-dtype labels.
# ---------------------------------------------------------------------------
def _dice_stats_flat_kernel(x_ref, y_ref, tp_ref, fp_ref, fn_ref,
                            acc_tp, acc_x, acc_cnt, *, hw_total, need_mask):
    t = pl.program_id(1)

    @pl.when(t == 0)
    def _init():
        acc_tp[...] = jnp.zeros_like(acc_tp)
        acc_x[...] = jnp.zeros_like(acc_x)
        acc_cnt[...] = jnp.zeros_like(acc_cnt)

    x = x_ref[0].astype(jnp.float32)             # (C, T)
    lbl = y_ref[0].astype(jnp.int32)             # (1, T)
    C, T = x.shape

    chan = lax.broadcasted_iota(jnp.int32, (C, T), 0)
    sel = lbl == chan                            # (C, T) one-hot mask
    if need_mask:
        col = lax.broadcasted_iota(jnp.int32, (1, T), 1) + t * T
        valid = col < hw_total
        sel = jnp.logical_and(sel, valid)
        x = jnp.where(valid, x, 0.0)

    acc_tp[...] += jnp.where(sel, x, 0.0)
    acc_x[...] += x
    acc_cnt[...] += sel.astype(jnp.float32)

    @pl.when(t == pl.num_programs(1) - 1)
    def _finalize():
        tp = jnp.sum(acc_tp[...], axis=-1, keepdims=True)
        sx = jnp.sum(acc_x[...], axis=-1, keepdims=True)
        cnt = jnp.sum(acc_cnt[...], axis=-1, keepdims=True)
        tp_ref[0] = tp
        fp_ref[0] = sx - tp
        fn_ref[0] = cnt - tp


def _dice_stats_flat(x2, y2, max_tile):
    assert max_tile % _LANE == 0
    B, C, HW = x2.shape
    T = HW if HW <= max_tile else int(max_tile)  # T==HW hits the "full dim" rule
    nt = _cdiv(HW, T)
    need_mask = (nt * T) != HW

    out_sd = jax.ShapeDtypeStruct((B, C, 1), jnp.float32)
    stat_spec = pl.BlockSpec((1, C, 1), lambda b, t: (b, 0, 0))
    kernel = functools.partial(_dice_stats_flat_kernel,
                               hw_total=HW, need_mask=need_mask)
    tp, fp, fn = pl.pallas_call(
        kernel,
        out_shape=(out_sd, out_sd, out_sd),
        grid=(B, nt),
        in_specs=[
            pl.BlockSpec((1, C, T), lambda b, t: (b, 0, t)),
            pl.BlockSpec((1, 1, T), lambda b, t: (b, 0, t)),
        ],
        out_specs=(stat_spec, stat_spec, stat_spec),
        scratch_shapes=[pltpu.VMEM((C, T), jnp.float32)] * 3,
        compiler_params=pltpu.CompilerParams(
            dimension_semantics=("parallel", "arbitrary"),
            vmem_limit_bytes=32 * 1024 * 1024),
    )(x2, y2)
    return tp[..., 0], fp[..., 0], fn[..., 0]


# ---------------------------------------------------------------------------
# Wrapper / loss glue.
# ---------------------------------------------------------------------------
def dice_stats(x, y, *, target_block_bytes=4 * 1024 * 1024, max_flat_tile=8192):
    """Per-(b, c) spatially reduced tp/fp/fn, each of shape (B, C) float32."""
    B, C = x.shape[:2]
    if y.ndim == x.ndim - 1:                       # (B, *spatial) label map
        y = y.reshape(y.shape[0], 1, *y.shape[1:])
    if y.shape == x.shape and C > 1:
        # TODO(synk): pre-one-hot-encoded gt (y.shape == x.shape) path not implemented.
        raise NotImplementedError("pre-one-hot-encoded gt is not supported")

    HW = int(np.prod(x.shape[2:]))
    x2 = x.reshape(B, C, HW)
    y2 = y.reshape(B, 1, HW)
    if not jnp.issubdtype(y2.dtype, jnp.integer):
        y2 = y2.astype(jnp.int32)                  # labels used as class ids

    R = HW // _LANE
    if HW % _LANE == 0 and R >= 32:
        return _dice_stats_packed(x2.reshape(B, C, R, _LANE),
                                  y2.reshape(B, 1, R, _LANE),
                                  target_block_bytes)
    return _dice_stats_flat(x2, y2, max_flat_tile)


def soft_dice_loss(x, y, loss_mask=None, smooth=1.0, batch_dice=False,
                   do_bg=True, clip_tp=None, apply_nonlin=None, **kw):
    """Forward of SoftDiceLoss (default ctor args: apply_nonlin=None)."""
    if loss_mask is not None:
        # TODO(synk): loss_mask weighting not wired into the kernel.
        raise NotImplementedError("loss_mask is not supported")
    if apply_nonlin is not None:
        x = apply_nonlin(x)
    tp, fp, fn = dice_stats(x, y, **kw)            # each (B, C)
    if batch_dice:
        # ddp AllGatherGrad(...).sum(0) is a no-op on a single device.
        tp, fp, fn = tp.sum(0), fp.sum(0), fn.sum(0)
    if clip_tp is not None:
        tp = jnp.clip(tp, min=clip_tp)
    nominator = 2.0 * tp
    denominator = 2.0 * tp + fp + fn
    dc = (nominator + smooth) / jnp.clip(denominator + smooth, min=1e-8)
    if not do_bg:
        dc = dc[1:] if batch_dice else dc[:, 1:]
    return -dc.mean()


def _reference_loss(x, y, smooth=1.0, batch_dice=False, do_bg=True):
    """Pure-JAX reference mirroring the PyTorch forward."""
    C = x.shape[1]
    if y.ndim == x.ndim - 1:
        y = y[:, None]
    xf = x.astype(jnp.float32)
    y_onehot = jax.nn.one_hot(y[:, 0], C, axis=1, dtype=jnp.float32)
    axes = tuple(range(2, x.ndim))
    tp = (xf * y_onehot).sum(axes)
    fp = (xf * (1.0 - y_onehot)).sum(axes)
    fn = ((1.0 - xf) * y_onehot).sum(axes)
    if batch_dice:
        tp, fp, fn = tp.sum(0), fp.sum(0), fn.sum(0)
    dc = (2.0 * tp + smooth) / jnp.clip(2.0 * tp + fp + fn + smooth, min=1e-8)
    if not do_bg:
        dc = dc[1:] if batch_dice else dc[:, 1:]
    return -dc.mean()


def _make_inputs(key, shape, label_dtype=jnp.int32, x_dtype=jnp.float32):
    B, C = shape[:2]
    kx, ky = jax.random.split(key)
    x = jax.nn.softmax(jax.random.normal(kx, shape, jnp.float32), axis=1)
    y = jax.random.randint(ky, (B, 1) + shape[2:], 0, C, dtype=jnp.int32)
    return x.astype(x_dtype), y.astype(label_dtype)


def _assert_close(name, got, want, rtol=1e-5, atol=1e-5):
    got = np.asarray(jax.block_until_ready(got))
    want = np.asarray(jax.block_until_ready(want))
    assert np.allclose(got, want, rtol=rtol, atol=atol), (
        f"{name}: got {got} want {want}")


if __name__ == "__main__":
    keys = jax.random.split(jax.random.PRNGKey(0), 6)

    # 1) packed path: single row-tile, exact coverage (no mask).
    x1, y1 = _make_inputs(keys[0], (2, 4, 64, 64))
    _assert_close("packed/single", soft_dice_loss(x1, y1), _reference_loss(x1, y1))

    # 2) packed path: multi-tile reduction, partial (row-masked) last block,
    #    int8 label stream.
    x2, y2 = _make_inputs(keys[1], (2, 4, 80, 80), label_dtype=jnp.int8)
    _assert_close("packed/masked", soft_dice_loss(x2, y2), _reference_loss(x2, y2))

    # 3) packed path: B == 1 -> 2-way spatial split (both v7x TCs), odd tile
    #    count exercises the clamped + fully-masked overhang block.
    x3, y3 = _make_inputs(keys[2], (1, 4, 144, 144), label_dtype=jnp.int8)
    _assert_close("packed/b1_split", soft_dice_loss(x3, y3), _reference_loss(x3, y3))

    # 4) packed path: bf16 probabilities (f32 accumulation in-kernel).
    xb = x2.astype(jnp.bfloat16)
    _assert_close("packed/bf16", soft_dice_loss(xb, y2), _reference_loss(xb, y2),
                  rtol=1e-4, atol=1e-4)

    # 5) flat fallback: HW % 128 == 0 but too few 128-lane rows to pack.
    x5, y5 = _make_inputs(keys[3], (2, 4, 16, 16))
    _assert_close("flat/single", soft_dice_loss(x5, y5), _reference_loss(x5, y5))

    # 6) flat fallback: multi-tile + lane-masked remainder (HW % 128 != 0).
    x6, y6 = _make_inputs(keys[4], (2, 4, 12, 12), label_dtype=jnp.int8)
    _assert_close("flat/masked", soft_dice_loss(x6, y6, max_flat_tile=128),
                  _reference_loss(x6, y6))

    # 7) loss-glue flags (batch_dice / do_bg).
    _assert_close("flags", soft_dice_loss(x2, y2, batch_dice=True, do_bg=False),
                  _reference_loss(x2, y2, batch_dice=True, do_bg=False))

    print("KERNEL_OK")
</pallas_src>

<mosaic_0001>
module attributes {stable_mosaic.version = 11 : i64} {
  func.func @_dice_stats_packed_kernel(%arg0: i32, %arg1: i32, %arg2: i32, %arg3: memref<1x4x32x128xf32, #tpu.memory_space<vmem>>, %arg4: memref<1x1x32x128xi32, #tpu.memory_space<vmem>>, %arg5: memref<1x1x4x1xf32, #tpu.memory_space<vmem>>, %arg6: memref<1x1x4x1xf32, #tpu.memory_space<vmem>>, %arg7: memref<1x1x4x1xf32, #tpu.memory_space<vmem>>, %arg8: memref<4x8x128xf32, #tpu.memory_space<vmem>>, %arg9: memref<4x8x128xf32, #tpu.memory_space<vmem>>, %arg10: memref<4x8x128xf32, #tpu.memory_space<vmem>>) attributes {dimension_semantics = [#tpu.dimension_semantics<parallel>, #tpu.dimension_semantics<parallel>, #tpu.dimension_semantics<arbitrary>], iteration_bounds = array<i64: 1, 2, 1>, scalar_prefetch = 0 : i64, scratch_operands = 3 : i64, tpu.core_type = #tpu.core_type<tc>, window_params = [{transform_indices = @transform_0, window_bounds = array<i64: 1, 4, 32, 128>}, {transform_indices = @transform_1, window_bounds = array<i64: 1, 1, 32, 128>}, {transform_indices = @transform_2, window_bounds = array<i64: 1, 1, 4, 1>}, {transform_indices = @transform_3, window_bounds = array<i64: 1, 1, 4, 1>}, {transform_indices = @transform_4, window_bounds = array<i64: 1, 1, 4, 1>}]} {
    %c0_i32 = arith.constant 0 : i32
    %0 = arith.cmpi eq, %arg2, %c0_i32 : i32
    %1 = arith.extui %0 : i1 to i32
    %c0_i32_0 = arith.constant 0 : i32
    %2 = arith.cmpi ne, %1, %c0_i32_0 : i32
    scf.if %2 {
      %cst_107 = arith.constant 0.000000e+00 : f32
      %129 = vector.broadcast %cst_107 : f32 to vector<4x8x128xf32>
      %c0_108 = arith.constant 0 : index
      %c0_109 = arith.constant 0 : index
      %c0_110 = arith.constant 0 : index
      %130 = vector.load %arg8[%c0_108, %c0_109, %c0_110] : memref<4x8x128xf32, #tpu.memory_space<vmem>>, vector<4x8x128xf32>
      tpu.vector_store %arg8[%c0_108, %c0_109, %c0_110], %129 {strides = array<i32>} : memref<4x8x128xf32, #tpu.memory_space<vmem>>, vector<4x8x128xf32>,
      %cst_111 = arith.constant 0.000000e+00 : f32
      %131 = vector.broadcast %cst_111 : f32 to vector<4x8x128xf32>
      %c0_112 = arith.constant 0 : index
      %c0_113 = arith.constant 0 : index
      %c0_114 = arith.constant 0 : index
      %132 = vector.load %arg9[%c0_112, %c0_113, %c0_114] : memref<4x8x128xf32, #tpu.memory_space<vmem>>, vector<4x8x128xf32>
      tpu.vector_store %arg9[%c0_112, %c0_113, %c0_114], %131 {strides = array<i32>} : memref<4x8x128xf32, #tpu.memory_space<vmem>>, vector<4x8x128xf32>,
      %cst_115 = arith.constant 0.000000e+00 : f32
      %133 = vector.broadcast %cst_115 : f32 to vector<4x8x128xf32>
      %c0_116 = arith.constant 0 : index
      %c0_117 = arith.constant 0 : index
      %c0_118 = arith.constant 0 : index
      %134 = vector.load %arg10[%c0_116, %c0_117, %c0_118] : memref<4x8x128xf32, #tpu.memory_space<vmem>>, vector<4x8x128xf32>
      tpu.vector_store %arg10[%c0_116, %c0_117, %c0_118], %133 {strides = array<i32>} : memref<4x8x128xf32, #tpu.memory_space<vmem>>, vector<4x8x128xf32>,
    } else {
    }
    %c0 = arith.constant 0 : index
    %c0_1 = arith.constant 0 : index
    %c0_2 = arith.constant 0 : index
    %c0_3 = arith.constant 0 : index
    %3 = vector.load %arg4[%c0, %c0_1, %c0_2, %c0_3] : memref<1x1x32x128xi32, #tpu.memory_space<vmem>>, vector<1x1x32x128xi32>
    %4 = vector.shape_cast %3 : vector<1x1x32x128xi32> to vector<32x128xi32>
    %5 = vector.shape_cast %4 : vector<32x128xi32> to vector<4x8x128xi32>
    %c0_4 = arith.constant 0 : index
    %c0_5 = arith.constant 0 : index
    %c0_6 = arith.constant 0 : index
    %c0_7 = arith.constant 0 : index
    %6 = vector.load %arg3[%c0_4, %c0_5, %c0_6, %c0_7] : memref<1x4x32x128xf32, #tpu.memory_space<vmem>>, vector<1x1x32x128xf32>
    %7 = vector.shape_cast %6 : vector<1x1x32x128xf32> to vector<32x128xf32>
    %8 = vector.shape_cast %7 : vector<32x128xf32> to vector<4x8x128xf32>
    %c0_i32_8 = arith.constant 0 : i32
    %9 = vector.broadcast %c0_i32_8 : i32 to vector<4x8x128xi32>
    %10 = arith.cmpi eq, %5, %9 : vector<4x8x128xi32>
    %c0_9 = arith.constant 0 : index
    %c0_10 = arith.constant 0 : index
    %c0_11 = arith.constant 0 : index
    %11 = vector.load %arg8[%c0_9, %c0_10, %c0_11] : memref<4x8x128xf32, #tpu.memory_space<vmem>>, vector<1x8x128xf32>
    %12 = vector.shape_cast %11 : vector<1x8x128xf32> to vector<8x128xf32>
    %cst = arith.constant 0.000000e+00 : f32
    %13 = vector.broadcast %cst : f32 to vector<4x8x128xf32>
    %14 = arith.select %10, %8, %13 : vector<4x8x128xi1>, vector<4x8x128xf32>
    %cst_12 = arith.constant dense<0.000000e+00> : vector<8x128xf32>
    %15 = vector.multi_reduction <add>, %14, %cst_12 [0] : vector<4x8x128xf32> to vector<8x128xf32>
    %16 = arith.addf %12, %15 : vector<8x128xf32>
    %c0_13 = arith.constant 0 : index
    %c0_14 = arith.constant 0 : index
    %c0_15 = arith.constant 0 : index
    %17 = vector.load %arg8[%c0_13, %c0_14, %c0_15] : memref<4x8x128xf32, #tpu.memory_space<vmem>>, vector<1x8x128xf32>
    %18 = vector.shape_cast %17 : vector<1x8x128xf32> to vector<8x128xf32>
    %19 = vector.shape_cast %16 : vector<8x128xf32> to vector<1x8x128xf32>
    tpu.vector_store %arg8[%c0_13, %c0_14, %c0_15], %19 {strides = array<i32>} : memref<4x8x128xf32, #tpu.memory_space<vmem>>, vector<1x8x128xf32>,
    %c0_16 = arith.constant 0 : index
    %c0_17 = arith.constant 0 : index
    %c0_18 = arith.constant 0 : index
    %20 = vector.load %arg9[%c0_16, %c0_17, %c0_18] : memref<4x8x128xf32, #tpu.memory_space<vmem>>, vector<1x8x128xf32>
    %21 = vector.shape_cast %20 : vector<1x8x128xf32> to vector<8x128xf32>
    %cst_19 = arith.constant dense<0.000000e+00> : vector<8x128xf32>
    %22 = vector.multi_reduction <add>, %8, %cst_19 [0] : vector<4x8x128xf32> to vector<8x128xf32>
    %23 = arith.addf %21, %22 : vector<8x128xf32>
    %c0_20 = arith.constant 0 : index
    %c0_21 = arith.constant 0 : index
    %c0_22 = arith.constant 0 : index
    %24 = vector.load %arg9[%c0_20, %c0_21, %c0_22] : memref<4x8x128xf32, #tpu.memory_space<vmem>>, vector<1x8x128xf32>
    %25 = vector.shape_cast %24 : vector<1x8x128xf32> to vector<8x128xf32>
    %26 = vector.shape_cast %23 : vector<8x128xf32> to vector<1x8x128xf32>
    tpu.vector_store %arg9[%c0_20, %c0_21, %c0_22], %26 {strides = array<i32>} : memref<4x8x128xf32, #tpu.memory_space<vmem>>, vector<1x8x128xf32>,
    %c0_23 = arith.constant 0 : index
    %c0_24 = arith.constant 0 : index
    %c0_25 = arith.constant 0 : index
    %27 = vector.load %arg10[%c0_23, %c0_24, %c0_25] : memref<4x8x128xf32, #tpu.memory_space<vmem>>, vector<1x8x128xf32>
    %28 = vector.shape_cast %27 : vector<1x8x128xf32> to vector<8x128xf32>
    %29 = arith.extui %10 : vector<4x8x128xi1> to vector<4x8x128xi32>
    %30 = arith.sitofp %29 : vector<4x8x128xi32> to vector<4x8x128xf32>
    %cst_26 = arith.constant dense<0.000000e+00> : vector<8x128xf32>
    %31 = vector.multi_reduction <add>, %30, %cst_26 [0] : vector<4x8x128xf32> to vector<8x128xf32>
    %32 = arith.addf %28, %31 : vector<8x128xf32>
    %c0_27 = arith.constant 0 : index
    %c0_28 = arith.constant 0 : index
    %c0_29 = arith.constant 0 : index
    %33 = vector.load %arg10[%c0_27, %c0_28, %c0_29] : memref<4x8x128xf32, #tpu.memory_space<vmem>>, vector<1x8x128xf32>
    %34 = vector.shape_cast %33 : vector<1x8x128xf32> to vector<8x128xf32>
    %35 = vector.shape_cast %32 : vector<8x128xf32> to vector<1x8x128xf32>
    tpu.vector_store %arg10[%c0_27, %c0_28, %c0_29], %35 {strides = array<i32>} : memref<4x8x128xf32, #tpu.memory_space<vmem>>, vector<1x8x128xf32>,
    %c0_30 = arith.constant 0 : index
    %c1 = arith.constant 1 : index
    %c0_31 = arith.constant 0 : index
    %c0_32 = arith.constant 0 : index
    %36 = vector.load %arg3[%c0_30, %c1, %c0_31, %c0_32] : memref<1x4x32x128xf32, #tpu.memory_space<vmem>>, vector<1x1x32x128xf32>
    %37 = vector.shape_cast %36 : vector<1x1x32x128xf32> to vector<32x128xf32>
    %38 = vector.shape_cast %37 : vector<32x128xf32> to vector<4x8x128xf32>
    %c1_i32 = arith.constant 1 : i32
    %39 = vector.broadcast %c1_i32 : i32 to vector<4x8x128xi32>
    %40 = arith.cmpi eq, %5, %39 : vector<4x8x128xi32>
    %c1_33 = arith.constant 1 : index
    %c0_34 = arith.constant 0 : index
    %c0_35 = arith.constant 0 : index
    %41 = vector.load %arg8[%c1_33, %c0_34, %c0_35] : memref<4x8x128xf32, #tpu.memory_space<vmem>>, vector<1x8x128xf32>
    %42 = vector.shape_cast %41 : vector<1x8x128xf32> to vector<8x128xf32>
    %cst_36 = arith.constant 0.000000e+00 : f32
    %43 = vector.broadcast %cst_36 : f32 to vector<4x8x128xf32>
    %44 = arith.select %40, %38, %43 : vector<4x8x128xi1>, vector<4x8x128xf32>
    %cst_37 = arith.constant dense<0.000000e+00> : vector<8x128xf32>
    %45 = vector.multi_reduction <add>, %44, %cst_37 [0] : vector<4x8x128xf32> to vector<8x128xf32>
    %46 = arith.addf %42, %45 : vector<8x128xf32>
    %c1_38 = arith.constant 1 : index
    %c0_39 = arith.constant 0 : index
    %c0_40 = arith.constant 0 : index
    %47 = vector.load %arg8[%c1_38, %c0_39, %c0_40] : memref<4x8x128xf32, #tpu.memory_space<vmem>>, vector<1x8x128xf32>
    %48 = vector.shape_cast %47 : vector<1x8x128xf32> to vector<8x128xf32>
    %49 = vector.shape_cast %46 : vector<8x128xf32> to vector<1x8x128xf32>
    tpu.vector_store %arg8[%c1_38, %c0_39, %c0_40], %49 {strides = array<i32>} : memref<4x8x128xf32, #tpu.memory_space<vmem>>, vector<1x8x128xf32>,
    %c1_41 = arith.constant 1 : index
    %c0_42 = arith.constant 0 : index
    %c0_43 = arith.constant 0 : index
    %50 = vector.load %arg9[%c1_41, %c0_42, %c0_43] : memref<4x8x128xf32, #tpu.memory_space<vmem>>, vector<1x8x128xf32>
    %51 = vector.shape_cast %50 : vector<1x8x128xf32> to vector<8x128xf32>
    %cst_44 = arith.constant dense<0.000000e+00> : vector<8x128xf32>
    %52 = vector.multi_reduction <add>, %38, %cst_44 [0] : vector<4x8x128xf32> to vector<8x128xf32>
    %53 = arith.addf %51, %52 : vector<8x128xf32>
    %c1_45 = arith.constant 1 : index
    %c0_46 = arith.constant 0 : index
    %c0_47 = arith.constant 0 : index
    %54 = vector.load %arg9[%c1_45, %c0_46, %c0_47] : memref<4x8x128xf32, #tpu.memory_space<vmem>>, vector<1x8x128xf32>
    %55 = vector.shape_cast %54 : vector<1x8x128xf32> to vector<8x128xf32>
    %56 = vector.shape_cast %53 : vector<8x128xf32> to vector<1x8x128xf32>
    tpu.vector_store %arg9[%c1_45, %c0_46, %c0_47], %56 {strides = array<i32>} : memref<4x8x128xf32, #tpu.memory_space<vmem>>, vector<1x8x128xf32>,
    %c1_48 = arith.constant 1 : index
    %c0_49 = arith.constant 0 : index
    %c0_50 = arith.constant 0 : index
    %57 = vector.load %arg10[%c1_48, %c0_49, %c0_50] : memref<4x8x128xf32, #tpu.memory_space<vmem>>, vector<1x8x128xf32>
    %58 = vector.shape_cast %57 : vector<1x8x128xf32> to vector<8x128xf32>
    %59 = arith.extui %40 : vector<4x8x128xi1> to vector<4x8x128xi32>
    %60 = arith.sitofp %59 : vector<4x8x128xi32> to vector<4x8x128xf32>
    %cst_51 = arith.constant dense<0.000000e+00> : vector<8x128xf32>
    %61 = vector.multi_reduction <add>, %60, %cst_51 [0] : vector<4x8x128xf32> to vector<8x128xf32>
    %62 = arith.addf %58, %61 : vector<8x128xf32>
    %c1_52 = arith.constant 1 : index
    %c0_53 = arith.constant 0 : index
    %c0_54 = arith.constant 0 : index
    %63 = vector.load %arg10[%c1_52, %c0_53, %c0_54] : memref<4x8x128xf32, #tpu.memory_space<vmem>>, vector<1x8x128xf32>
    %64 = vector.shape_cast %63 : vector<1x8x128xf32> to vector<8x128xf32>
    %65 = vector.shape_cast %62 : vector<8x128xf32> to vector<1x8x128xf32>
    tpu.vector_store %arg10[%c1_52, %c0_53, %c0_54], %65 {strides = array<i32>} : memref<4x8x128xf32, #tpu.memory_space<vmem>>, vector<1x8x128xf32>,
    %c0_55 = arith.constant 0 : index
    %c2 = arith.constant 2 : index
    %c0_56 = arith.constant 0 : index
    %c0_57 = arith.constant 0 : index
    %66 = vector.load %arg3[%c0_55, %c2, %c0_56, %c0_57] : memref<1x4x32x128xf32, #tpu.memory_space<vmem>>, vector<1x1x32x128xf32>
    %67 = vector.shape_cast %66 : vector<1x1x32x128xf32> to vector<32x128xf32>
    %68 = vector.shape_cast %67 : vector<32x128xf32> to vector<4x8x128xf32>
    %c2_i32 = arith.constant 2 : i32
    %69 = vector.broadcast %c2_i32 : i32 to vector<4x8x128xi32>
    %70 = arith.cmpi eq, %5, %69 : vector<4x8x128xi32>
    %c2_58 = arith.constant 2 : index
    %c0_59 = arith.constant 0 : index
    %c0_60 = arith.constant 0 : index
    %71 = vector.load %arg8[%c2_58, %c0_59, %c0_60] : memref<4x8x128xf32, #tpu.memory_space<vmem>>, vector<1x8x128xf32>
    %72 = vector.shape_cast %71 : vector<1x8x128xf32> to vector<8x128xf32>
    %cst_61 = arith.constant 0.000000e+00 : f32
    %73 = vector.broadcast %cst_61 : f32 to vector<4x8x128xf32>
    %74 = arith.select %70, %68, %73 : vector<4x8x128xi1>, vector<4x8x128xf32>
    %cst_62 = arith.constant dense<0.000000e+00> : vector<8x128xf32>
    %75 = vector.multi_reduction <add>, %74, %cst_62 [0] : vector<4x8x128xf32> to vector<8x128xf32>
    %76 = arith.addf %72, %75 : vector<8x128xf32>
    %c2_63 = arith.constant 2 : index
    %c0_64 = arith.constant 0 : index
    %c0_65 = arith.constant 0 : index
    %77 = vector.load %arg8[%c2_63, %c0_64, %c0_65] : memref<4x8x128xf32, #tpu.memory_space<vmem>>, vector<1x8x128xf32>
    %78 = vector.shape_cast %77 : vector<1x8x128xf32> to vector<8x128xf32>
    %79 = vector.shape_cast %76 : vector<8x128xf32> to vector<1x8x128xf32>
    tpu.vector_store %arg8[%c2_63, %c0_64, %c0_65], %79 {strides = array<i32>} : memref<4x8x128xf32, #tpu.memory_space<vmem>>, vector<1x8x128xf32>,
    %c2_66 = arith.constant 2 : index
    %c0_67 = arith.constant 0 : index
    %c0_68 = arith.constant 0 : index
    %80 = vector.load %arg9[%c2_66, %c0_67, %c0_68] : memref<4x8x128xf32, #tpu.memory_space<vmem>>, vector<1x8x128xf32>
    %81 = vector.shape_cast %80 : vector<1x8x128xf32> to vector<8x128xf32>
    %cst_69 = arith.constant dense<0.000000e+00> : vector<8x128xf32>
    %82 = vector.multi_reduction <add>, %68, %cst_69 [0] : vector<4x8x128xf32> to vector<8x128xf32>
    %83 = arith.addf %81, %82 : vector<8x128xf32>
    %c2_70 = arith.constant 2 : index
    %c0_71 = arith.constant 0 : index
    %c0_72 = arith.constant 0 : index
    %84 = vector.load %arg9[%c2_70, %c0_71, %c0_72] : memref<4x8x128xf32, #tpu.memory_space<vmem>>, vector<1x8x128xf32>
    %85 = vector.shape_cast %84 : vector<1x8x128xf32> to vector<8x128xf32>
    %86 = vector.shape_cast %83 : vector<8x128xf32> to vector<1x8x128xf32>
    tpu.vector_store %arg9[%c2_70, %c0_71, %c0_72], %86 {strides = array<i32>} : memref<4x8x128xf32, #tpu.memory_space<vmem>>, vector<1x8x128xf32>,
    %c2_73 = arith.constant 2 : index
    %c0_74 = arith.constant 0 : index
    %c0_75 = arith.constant 0 : index
    %87 = vector.load %arg10[%c2_73, %c0_74, %c0_75] : memref<4x8x128xf32, #tpu.memory_space<vmem>>, vector<1x8x128xf32>
    %88 = vector.shape_cast %87 : vector<1x8x128xf32> to vector<8x128xf32>
    %89 = arith.extui %70 : vector<4x8x128xi1> to vector<4x8x128xi32>
    %90 = arith.sitofp %89 : vector<4x8x128xi32> to vector<4x8x128xf32>
    %cst_76 = arith.constant dense<0.000000e+00> : vector<8x128xf32>
    %91 = vector.multi_reduction <add>, %90, %cst_76 [0] : vector<4x8x128xf32> to vector<8x128xf32>
    %92 = arith.addf %88, %91 : vector<8x128xf32>
    %c2_77 = arith.constant 2 : index
    %c0_78 = arith.constant 0 : index
    %c0_79 = arith.constant 0 : index
    %93 = vector.load %arg10[%c2_77, %c0_78, %c0_79] : memref<4x8x128xf32, #tpu.memory_space<vmem>>, vector<1x8x128xf32>
    %94 = vector.shape_cast %93 : vector<1x8x128xf32> to vector<8x128xf32>
    %95 = vector.shape_cast %92 : vector<8x128xf32> to vector<1x8x128xf32>
    tpu.vector_store %arg10[%c2_77, %c0_78, %c0_79], %95 {strides = array<i32>} : memref<4x8x128xf32, #tpu.memory_space<vmem>>, vector<1x8x128xf32>,
    %c0_80 = arith.constant 0 : index
    %c3 = arith.constant 3 : index
    %c0_81 = arith.constant 0 : index
    %c0_82 = arith.constant 0 : index
    %96 = vector.load %arg3[%c0_80, %c3, %c0_81, %c0_82] : memref<1x4x32x128xf32, #tpu.memory_space<vmem>>, vector<1x1x32x128xf32>
    %97 = vector.shape_cast %96 : vector<1x1x32x128xf32> to vector<32x128xf32>
    %98 = vector.shape_cast %97 : vector<32x128xf32> to vector<4x8x128xf32>
    %c3_i32 = arith.constant 3 : i32
    %99 = vector.broadcast %c3_i32 : i32 to vector<4x8x128xi32>
    %100 = arith.cmpi eq, %5, %99 : vector<4x8x128xi32>
    %c3_83 = arith.constant 3 : index
    %c0_84 = arith.constant 0 : index
    %c0_85 = arith.constant 0 : index
    %101 = vector.load %arg8[%c3_83, %c0_84, %c0_85] : memref<4x8x128xf32, #tpu.memory_space<vmem>>, vector<1x8x128xf32>
    %102 = vector.shape_cast %101 : vector<1x8x128xf32> to vector<8x128xf32>
    %cst_86 = arith.constant 0.000000e+00 : f32
    %103 = vector.broadcast %cst_86 : f32 to vector<4x8x128xf32>
    %104 = arith.select %100, %98, %103 : vector<4x8x128xi1>, vector<4x8x128xf32>
    %cst_87 = arith.constant dense<0.000000e+00> : vector<8x128xf32>
    %105 = vector.multi_reduction <add>, %104, %cst_87 [0] : vector<4x8x128xf32> to vector<8x128xf32>
    %106 = arith.addf %102, %105 : vector<8x128xf32>
    %c3_88 = arith.constant 3 : index
    %c0_89 = arith.constant 0 : index
    %c0_90 = arith.constant 0 : index
    %107 = vector.load %arg8[%c3_88, %c0_89, %c0_90] : memref<4x8x128xf32, #tpu.memory_space<vmem>>, vector<1x8x128xf32>
    %108 = vector.shape_cast %107 : vector<1x8x128xf32> to vector<8x128xf32>
    %109 = vector.shape_cast %106 : vector<8x128xf32> to vector<1x8x128xf32>
    tpu.vector_store %arg8[%c3_88, %c0_89, %c0_90], %109 {strides = array<i32>} : memref<4x8x128xf32, #tpu.memory_space<vmem>>, vector<1x8x128xf32>,
    %c3_91 = arith.constant 3 : index
    %c0_92 = arith.constant 0 : index
    %c0_93 = arith.constant 0 : index
    %110 = vector.load %arg9[%c3_91, %c0_92, %c0_93] : memref<4x8x128xf32, #tpu.memory_space<vmem>>, vector<1x8x128xf32>
    %111 = vector.shape_cast %110 : vector<1x8x128xf32> to vector<8x128xf32>
    %cst_94 = arith.constant dense<0.000000e+00> : vector<8x128xf32>
    %112 = vector.multi_reduction <add>, %98, %cst_94 [0] : vector<4x8x128xf32> to vector<8x128xf32>
    %113 = arith.addf %111, %112 : vector<8x128xf32>
    %c3_95 = arith.constant 3 : index
    %c0_96 = arith.constant 0 : index
    %c0_97 = arith.constant 0 : index
    %114 = vector.load %arg9[%c3_95, %c0_96, %c0_97] : memref<4x8x128xf32, #tpu.memory_space<vmem>>, vector<1x8x128xf32>
    %115 = vector.shape_cast %114 : vector<1x8x128xf32> to vector<8x128xf32>
    %116 = vector.shape_cast %113 : vector<8x128xf32> to vector<1x8x128xf32>
    tpu.vector_store %arg9[%c3_95, %c0_96, %c0_97], %116 {strides = array<i32>} : memref<4x8x128xf32, #tpu.memory_space<vmem>>, vector<1x8x128xf32>,
    %c3_98 = arith.constant 3 : index
    %c0_99 = arith.constant 0 : index
    %c0_100 = arith.constant 0 : index
    %117 = vector.load %arg10[%c3_98, %c0_99, %c0_100] : memref<4x8x128xf32, #tpu.memory_space<vmem>>, vector<1x8x128xf32>
    %118 = vector.shape_cast %117 : vector<1x8x128xf32> to vector<8x128xf32>
    %119 = arith.extui %100 : vector<4x8x128xi1> to vector<4x8x128xi32>
    %120 = arith.sitofp %119 : vector<4x8x128xi32> to vector<4x8x128xf32>
    %cst_101 = arith.constant dense<0.000000e+00> : vector<8x128xf32>
    %121 = vector.multi_reduction <add>, %120, %cst_101 [0] : vector<4x8x128xf32> to vector<8x128xf32>
    %122 = arith.addf %118, %121 : vector<8x128xf32>
    %c3_102 = arith.constant 3 : index
    %c0_103 = arith.constant 0 : index
    %c0_104 = arith.constant 0 : index
    %123 = vector.load %arg10[%c3_102, %c0_103, %c0_104] : memref<4x8x128xf32, #tpu.memory_space<vmem>>, vector<1x8x128xf32>
    %124 = vector.shape_cast %123 : vector<1x8x128xf32> to vector<8x128xf32>
    %125 = vector.shape_cast %122 : vector<8x128xf32> to vector<1x8x128xf32>
    tpu.vector_store %arg10[%c3_102, %c0_103, %c0_104], %125 {strides = array<i32>} : memref<4x8x128xf32, #tpu.memory_space<vmem>>, vector<1x8x128xf32>,
    %c0_i32_105 = arith.constant 0 : i32
    %126 = arith.cmpi eq, %arg2, %c0_i32_105 : i32
    %127 = arith.extui %126 : i1 to i32
    %c0_i32_106 = arith.constant 0 : i32
    %128 = arith.cmpi ne, %127, %c0_i32_106 : i32
    scf.if %128 {
      %c0_107 = arith.constant 0 : index
      %c0_108 = arith.constant 0 : index
      %c0_109 = arith.constant 0 : index
      %129 = vector.load %arg8[%c0_107, %c0_108, %c0_109] : memref<4x8x128xf32, #tpu.memory_space<vmem>>, vector<4x8x128xf32>
      %cst_110 = arith.constant dense<0.000000e+00> : vector<4x8xf32>
      %130 = vector.multi_reduction <add>, %129, %cst_110 [2] : vector<4x8x128xf32> to vector<4x8xf32>
      %cst_111 = arith.constant dense<0.000000e+00> : vector<4xf32>
      %131 = vector.multi_reduction <add>, %130, %cst_111 [1] : vector<4x8xf32> to vector<4xf32>
      %132 = vector.shape_cast %131 : vector<4xf32> to vector<4x1xf32>
      %c0_112 = arith.constant 0 : index
      %c0_113 = arith.constant 0 : index
      %c0_114 = arith.constant 0 : index
      %133 = vector.load %arg9[%c0_112, %c0_113, %c0_114] : memref<4x8x128xf32, #tpu.memory_space<vmem>>, vector<4x8x128xf32>
      %cst_115 = arith.constant dense<0.000000e+00> : vector<4x8xf32>
      %134 = vector.multi_reduction <add>, %133, %cst_115 [2] : vector<4x8x128xf32> to vector<4x8xf32>
      %cst_116 = arith.constant dense<0.000000e+00> : vector<4xf32>
      %135 = vector.multi_reduction <add>, %134, %cst_116 [1] : vector<4x8xf32> to vector<4xf32>
      %136 = vector.shape_cast %135 : vector<4xf32> to vector<4x1xf32>
      %c0_117 = arith.constant 0 : index
      %c0_118 = arith.constant 0 : index
      %c0_119 = arith.constant 0 : index
      %137 = vector.load %arg10[%c0_117, %c0_118, %c0_119] : memref<4x8x128xf32, #tpu.memory_space<vmem>>, vector<4x8x128xf32>
      %cst_120 = arith.constant dense<0.000000e+00> : vector<4x8xf32>
      %138 = vector.multi_reduction <add>, %137, %cst_120 [2] : vector<4x8x128xf32> to vector<4x8xf32>
      %cst_121 = arith.constant dense<0.000000e+00> : vector<4xf32>
      %139 = vector.multi_reduction <add>, %138, %cst_121 [1] : vector<4x8xf32> to vector<4xf32>
      %140 = vector.shape_cast %139 : vector<4xf32> to vector<4x1xf32>
      %c0_122 = arith.constant 0 : index
      %c0_123 = arith.constant 0 : index
      %c0_124 = arith.constant 0 : index
      %c0_125 = arith.constant 0 : index
      %141 = vector.load %arg5[%c0_122, %c0_123, %c0_124, %c0_125] : memref<1x1x4x1xf32, #tpu.memory_space<vmem>>, vector<1x1x4x1xf32>
      %142 = vector.shape_cast %141 : vector<1x1x4x1xf32> to vector<4x1xf32>
      %143 = vector.shape_cast %132 : vector<4x1xf32> to vector<1x1x4x1xf32>
      tpu.vector_store %arg5[%c0_122, %c0_123, %c0_124, %c0_125], %143 {strides = array<i32>} : memref<1x1x4x1xf32, #tpu.memory_space<vmem>>, vector<1x1x4x1xf32>,
      %144 = arith.subf %136, %132 : vector<4x1xf32>
      %c0_126 = arith.constant 0 : index
      %c0_127 = arith.constant 0 : index
      %c0_128 = arith.constant 0 : index
      %c0_129 = arith.constant 0 : index
      %145 = vector.load %arg6[%c0_126, %c0_127, %c0_128, %c0_129] : memref<1x1x4x1xf32, #tpu.memory_space<vmem>>, vector<1x1x4x1xf32>
      %146 = vector.shape_cast %145 : vector<1x1x4x1xf32> to vector<4x1xf32>
      %147 = vector.shape_cast %144 : vector<4x1xf32> to vector<1x1x4x1xf32>
      tpu.vector_store %arg6[%c0_126, %c0_127, %c0_128, %c0_129], %147 {strides = array<i32>} : memref<1x1x4x1xf32, #tpu.memory_space<vmem>>, vector<1x1x4x1xf32>,
      %148 = arith.subf %140, %132 : vector<4x1xf32>
      %c0_130 = arith.constant 0 : index
      %c0_131 = arith.constant 0 : index
      %c0_132 = arith.constant 0 : index
      %c0_133 = arith.constant 0 : index
      %149 = vector.load %arg7[%c0_130, %c0_131, %c0_132, %c0_133] : memref<1x1x4x1xf32, #tpu.memory_space<vmem>>, vector<1x1x4x1xf32>
      %150 = vector.shape_cast %149 : vector<1x1x4x1xf32> to vector<4x1xf32>
      %151 = vector.shape_cast %148 : vector<4x1xf32> to vector<1x1x4x1xf32>
      tpu.vector_store %arg7[%c0_130, %c0_131, %c0_132, %c0_133], %151 {strides = array<i32>} : memref<1x1x4x1xf32, #tpu.memory_space<vmem>>, vector<1x1x4x1xf32>,
    } else {
    }
    return
  }
  func.func @transform_0(%arg0: i32, %arg1: i32, %arg2: i32) -> (i32, i32, i32, i32) {
    %c1_i32 = arith.constant 1 : i32
    %0 = arith.muli %arg0, %c1_i32 : i32
    %1 = arith.addi %0, %arg2 : i32
    %c0_i32 = arith.constant 0 : i32
    %2 = arith.minsi %1, %c0_i32 : i32
    %c0_i32_0 = arith.constant 0 : i32
    %c0_i32_1 = arith.constant 0 : i32
    %c0_i32_2 = arith.constant 0 : i32
    return %arg1, %c0_i32_0, %2, %c0_i32_1 : i32, i32, i32, i32
  }
  func.func @transform_1(%arg0: i32, %arg1: i32, %arg2: i32) -> (i32, i32, i32, i32) {
    %c1_i32 = arith.constant 1 : i32
    %0 = arith.muli %arg0, %c1_i32 : i32
    %1 = arith.addi %0, %arg2 : i32
    %c0_i32 = arith.constant 0 : i32
    %2 = arith.minsi %1, %c0_i32 : i32
    %c0_i32_0 = arith.constant 0 : i32
    %c0_i32_1 = arith.constant 0 : i32
    %c0_i32_2 = arith.constant 0 : i32
    return %arg1, %c0_i32_0, %2, %c0_i32_1 : i32, i32, i32, i32
  }
  func.func @transform_2(%arg0: i32, %arg1: i32, %arg2: i32) -> (i32, i32, i32, i32) {
    %c0_i32 = arith.constant 0 : i32
    %c0_i32_0 = arith.constant 0 : i32
    %c0_i32_1 = arith.constant 0 : i32
    return %arg0, %arg1, %c0_i32, %c0_i32_0 : i32, i32, i32, i32
  }
  func.func @transform_3(%arg0: i32, %arg1: i32, %arg2: i32) -> (i32, i32, i32, i32) {
    %c0_i32 = arith.constant 0 : i32
    %c0_i32_0 = arith.constant 0 : i32
    %c0_i32_1 = arith.constant 0 : i32
    return %arg0, %arg1, %c0_i32, %c0_i32_0 : i32, i32, i32, i32
  }
  func.func @transform_4(%arg0: i32, %arg1: i32, %arg2: i32) -> (i32, i32, i32, i32) {
    %c0_i32 = arith.constant 0 : i32
    %c0_i32_0 = arith.constant 0 : i32
    %c0_i32_1 = arith.constant 0 : i32
    return %arg0, %arg1, %c0_i32, %c0_i32_0 : i32, i32, i32, i32
  }
}

</mosaic_0001>

<llo_original>
// kernel: tpu_custom_call.1
$region0: #{tpu_custom_call.1}
  #allocation0 [shape = 'u32[]', space=smem, size = 0x4, offset = 0x4, fixed_abs, tag = 'smem constant byte address 0x4 - core index']
  #allocation1 [shape = 'u32[144,128]{1,0:T(1,128)}', space=vmem, size = 0x12000, scoped, tag = 'internal scratch']
  #allocation2 [shape = 'f32[4,8,128]{2,1,0:T(8,128)}', space=vmem, size = 0x4000, scoped, tag = 'scratch operand']
  #allocation3 [shape = 'f32[4,8,128]{2,1,0:T(8,128)}', space=vmem, size = 0x4000, scoped, tag = 'scratch operand']
  #allocation4 [shape = 'f32[4,8,128]{2,1,0:T(8,128)}', space=vmem, size = 0x4000, scoped, tag = 'scratch operand']
  %s0 = inlined_call_operand.hbm [shape: f32[2,4,32,128], index: 0, kind: input, shape index: {}]
  %s1 = inlined_call_operand.hbm [shape: s32[2,1,32,128], index: 1, kind: input, shape index: {}]
  %s2 = inlined_call_operand.vmem [shape: f32[1,2,4,1], index: 2, kind: output, shape index: {0}]
  %s3 = inlined_call_operand.vmem [shape: f32[1,2,4,1], index: 3, kind: output, shape index: {1}]
  %s4 = inlined_call_operand.vmem [shape: f32[1,2,4,1], index: 4, kind: output, shape index: {2}]
  %5 = xla_tuple %s2, %s3, %s4
  %s6 = sld [smem:[#allocation0]]
  $region73: #{tpu_custom_call.1} parent=0
    _
  %s8 = ssub.s32 1, %s6
  %s9 = scalar_select 0, %s8, %s6
  $region1: #{tpu_custom_call.1} parent=0
    #allocation5 [shape = 'u8[131072]{0}', space=vmem, size = 0x20000, scoped, tag = 'input window, operand 0']
    #allocation6 [shape = 's32[2]{0}', space=sflag, size = 0x8, scoped, tag = 'scoped memory for tpu_custom_call.1']
    #allocation7 [shape = 'u8[32768]{0}', space=vmem, size = 0x8000, scoped, tag = 'input window, operand 1']
    #allocation8 [shape = 's32[2]{0}', space=sflag, size = 0x8, scoped, tag = 'scoped memory for tpu_custom_call.1']
    %10 = vsyncpa [#allocation6], 0
    %s11 = scalar_lea.sflag [#allocation6], 1
    %12 = vsyncpa %s11, 0
    %13 = vsyncpa [#allocation8], 0
    %s14 = scalar_lea.sflag [#allocation8], 1
    %15 = vsyncpa %s14, 0
    loop: start=0, step=1, limit=4
    $region2: #{tpu_custom_call.1} parent=1 // loop_pre_header
      _
    $region3: #{tpu_custom_call.1} parent=1 // loop_header
      %s17 = sphi 0, %s21
      %p18 = scmp.ge.s32.totalorder %s17, 4
      %s24 = sphi 0, %s43
      %s25 = sphi 0, %s39
      %s26 = sphi 0, %s35
      %s27 = sphi 0, %s24
      %s28 = sphi 0, %s25
      %s29 = sphi 0, %s26
      %s30 = sphi 0, %s27
      %s31 = sphi 0, %s28
      %s32 = sphi 0, %s29
      %s54 = sphi 0, %s56
      %s57 = sphi 0, %s54
      %s58 = sphi 0, %s57
      %s74 = sphi 0, %s58
      %s88 = sphi 0, %s90
      %s91 = sphi 0, %s88
      %s92 = sphi 0, %s91
      %s108 = sphi 0, %s92
      %s116 = sphi 0, %s118
      %s119 = sphi 0, %s116
      %s120 = sphi 0, %s119
      %s136 = sphi 0, %s120
      %s144 = sphi 0, %s146
      %s147 = sphi 0, %s144
      %s148 = sphi 0, %s147
      %s164 = sphi 0, %s148
      %s172 = sphi 0, %s174
      %s175 = sphi 0, %s172
      %s176 = sphi 0, %s175
      %s192 = sphi 0, %s176
    $region4: #{tpu_custom_call.1} parent=1 // loop_header_branch
      %20 = sbr.rel (%p18) target = $region8
    $region5: #{tpu_custom_call.1} parent=1 // loop_body
      %s22 = ssub.s32 %s17, 1
      %s23 = ssub.s32 %s17, 2
      %s33 = sadd.s32 1, %s26
      %p34 = scmp.ge.s32.totalorder %s33, 1
      %s35 = scalar_select %p34, 0, %s33
      %s36 = sadd.s32 1, %s25
      %s37 = scalar_select %p34, %s36, %s25
      %p38 = scmp.ge.s32.totalorder %s37, 2
      %s39 = scalar_select %p38, 0, %s37
      %s40 = sadd.s32 1, %s24
      %s41 = scalar_select %p38, %s40, %s24
      %p42 = scmp.ge.s32.totalorder %s41, 1
      %s43 = scalar_select %p42, 0, %s41
      %s44 = sadd.s32 %s24, %s26
      %p45 = scmp.lt.s32.totalorder %s44, 0
      %s46 = scalar_select %p45, %s44, 0
      %s47 = sadd.s32 %s43, %s35
      %p48 = scmp.lt.s32.totalorder %s47, 0
      %s49 = scalar_select %p48, %s47, 0
      %s50 = ssub.s32 %s25, %s39
      %s51 = ssub.s32 %s46, %s49
      %s52 = sor.u32 %s50, %s51
      %p53 = scmp.eq.s32.totalorder %s52, 0
      %s55 = sadd.s32 %s54, 1
      %s56 = scalar_select %p53, %s54, %s55
      %p59 = pneg %p53
      %p60 = scmp.eq.s32.totalorder %s17, 1
      %p61 = por %p59, %p60
      %p62 = scmp.ne.s32.totalorder %s54, %s57
      %p63 = scmp.eq.s32.totalorder %s17, 0
      %p64 = por %p62, %p63
      %p65 = scmp.ne.s32.totalorder %s54, %s57
      %p66 = scmp.eq.s32.totalorder %s22, 1
      %p67 = por %p65, %p66
      %p68 = scmp.ne.s32.totalorder %s57, %s58
      %p69 = scmp.eq.s32.totalorder %s22, 0
      %p70 = por %p68, %p69
      %p71 = scmp.ne.s32.totalorder %s57, %s58
      %p72 = scmp.eq.s32.totalorder %s23, 1
      %p73 = por %p71, %p72
      %p75 = scmp.ne.s32.totalorder %s58, %s74
      %p76 = scmp.eq.s32.totalorder %s23, 0
      %p77 = por %p75, %p76
      %s78 = sadd.s32 %s24, %s26
      %p79 = scmp.lt.s32.totalorder %s78, 0
      %s80 = scalar_select %p79, %s78, 0
      %s81 = sadd.s32 %s43, %s35
      %p82 = scmp.lt.s32.totalorder %s81, 0
      %s83 = scalar_select %p82, %s81, 0
      %s84 = ssub.s32 %s25, %s39
      %s85 = ssub.s32 %s80, %s83
      %s86 = sor.u32 %s84, %s85
      %p87 = scmp.eq.s32.totalorder %s86, 0
      %s89 = sadd.s32 %s88, 1
      %s90 = scalar_select %p87, %s88, %s89
      %p93 = pneg %p87
      %p94 = scmp.eq.s32.totalorder %s17, 1
      %p95 = por %p93, %p94
      %p96 = scmp.ne.s32.totalorder %s88, %s91
      %p97 = scmp.eq.s32.totalorder %s17, 0
      %p98 = por %p96, %p97
      %p99 = scmp.ne.s32.totalorder %s88, %s91
      %p100 = scmp.eq.s32.totalorder %s22, 1
      %p101 = por %p99, %p100
      %p102 = scmp.ne.s32.totalorder %s91, %s92
      %p103 = scmp.eq.s32.totalorder %s22, 0
      %p104 = por %p102, %p103
      %p105 = scmp.ne.s32.totalorder %s91, %s92
      %p106 = scmp.eq.s32.totalorder %s23, 1
      %p107 = por %p105, %p106
      %p109 = scmp.ne.s32.totalorder %s92, %s108
      %p110 = scmp.eq.s32.totalorder %s23, 0
      %p111 = por %p109, %p110
      %s112 = ssub.s32 %s24, %s43
      %s113 = ssub.s32 %s25, %s39
      %s114 = sor.u32 %s112, %s113
      %p115 = scmp.eq.s32.totalorder %s114, 0
      %s117 = sadd.s32 %s116, 1
      %s118 = scalar_select %p115, %s116, %s117
      %p121 = pneg %p115
      %p122 = scmp.eq.s32.totalorder %s17, 1
      %p123 = por %p121, %p122
      %p124 = scmp.ne.s32.totalorder %s116, %s119
      %p125 = scmp.eq.s32.totalorder %s17, 0
      %p126 = por %p124, %p125
      %p127 = scmp.ne.s32.totalorder %s116, %s119
      %p128 = scmp.eq.s32.totalorder %s22, 1
      %p129 = por %p127, %p128
      %p130 = scmp.ne.s32.totalorder %s119, %s120
      %p131 = scmp.eq.s32.totalorder %s22, 0
      %p132 = por %p130, %p131
      %p133 = scmp.ne.s32.totalorder %s119, %s120
      %p134 = scmp.eq.s32.totalorder %s23, 1
      %p135 = por %p133, %p134
      %p137 = scmp.ne.s32.totalorder %s120, %s136
      %p138 = scmp.eq.s32.totalorder %s23, 0
      %p139 = por %p137, %p138
      %s140 = ssub.s32 %s24, %s43
      %s141 = ssub.s32 %s25, %s39
      %s142 = sor.u32 %s140, %s141
      %p143 = scmp.eq.s32.totalorder %s142, 0
      %s145 = sadd.s32 %s144, 1
      %s146 = scalar_select %p143, %s144, %s145
      %p149 = pneg %p143
      %p150 = scmp.eq.s32.totalorder %s17, 1
      %p151 = por %p149, %p150
      %p152 = scmp.ne.s32.totalorder %s144, %s147
      %p153 = scmp.eq.s32.totalorder %s17, 0
      %p154 = por %p152, %p153
      %p155 = scmp.ne.s32.totalorder %s144, %s147
      %p156 = scmp.eq.s32.totalorder %s22, 1
      %p157 = por %p155, %p156
      %p158 = scmp.ne.s32.totalorder %s147, %s148
      %p159 = scmp.eq.s32.totalorder %s22, 0
      %p160 = por %p158, %p159
      %p161 = scmp.ne.s32.totalorder %s147, %s148
      %p162 = scmp.eq.s32.totalorder %s23, 1
      %p163 = por %p161, %p162
      %p165 = scmp.ne.s32.totalorder %s148, %s164
      %p166 = scmp.eq.s32.totalorder %s23, 0
      %p167 = por %p165, %p166
      %s168 = ssub.s32 %s24, %s43
      %s169 = ssub.s32 %s25, %s39
      %s170 = sor.u32 %s168, %s169
      %p171 = scmp.eq.s32.totalorder %s170, 0
      %s173 = sadd.s32 %s172, 1
      %s174 = scalar_select %p171, %s172, %s173
      %p177 = pneg %p171
      %p178 = scmp.eq.s32.totalorder %s17, 1
      %p179 = por %p177, %p178
      %p180 = scmp.ne.s32.totalorder %s172, %s175
      %p181 = scmp.eq.s32.totalorder %s17, 0
      %p182 = por %p180, %p181
      %p183 = scmp.ne.s32.totalorder %s172, %s175
      %p184 = scmp.eq.s32.totalorder %s22, 1
      %p185 = por %p183, %p184
      %p186 = scmp.ne.s32.totalorder %s175, %s176
      %p187 = scmp.eq.s32.totalorder %s22, 0
      %p188 = por %p186, %p187
      %p189 = scmp.ne.s32.totalorder %s175, %s176
      %p190 = scmp.eq.s32.totalorder %s23, 1
      %p191 = por %p189, %p190
      %p193 = scmp.ne.s32.totalorder %s176, %s192
      %p194 = scmp.eq.s32.totalorder %s23, 0
      %p195 = por %p193, %p194
      %p196 = scmp.le.s32.totalorder 1, %s17
      %p197 = scmp.lt.s32.totalorder %s17, 3
      %p198 = pnand %p196, %p197
      %p199 = pneg %p198
      // Predicated region
      $region9: #{tpu_custom_call.1} parent=5 // pred_check
        _
      $region10: #{tpu_custom_call.1} parent=5 // pred_check_branch
        %201 = sbr.rel (%p198) target = $region12
      $region11: #{tpu_custom_call.1} parent=5 // pred_region
        %s202 = ssub.s32 %s17, 1
      $region12: #{tpu_custom_call.1} parent=5 // pred_fallthru
        _
      %p203 = scmp.lt.s32.totalorder %s17, 2
      // Predicated region
      $region13: #{tpu_custom_call.1} parent=5 // pred_check
        %p204 = pneg %p203
      $region14: #{tpu_custom_call.1} parent=5 // pred_check_branch
        %206 = sbr.rel (%p204) target = $region16
      $region15: #{tpu_custom_call.1} parent=5 // pred_region
        // Predicated region
        $region17: #{tpu_custom_call.1} parent=15 // pred_check
          %p207 = pneg %p64
        $region18: #{tpu_custom_call.1} parent=15 // pred_check_branch
          %209 = sbr.rel (%p207) target = $region20
        $region19: #{tpu_custom_call.1} parent=15 // pred_region
          %s210 = sand.u32 %s54, 1
          %s211 = scalar_lea.sflag [#allocation6], %s210
          %s212 = sand.u32 %s54, 1
          %s213 = smul.addr %s212, 128
          %s214 = scalar_lea.vmem [#allocation5], %s213
          %s215 = sadd.s32 %s24, %s26
          %p216 = scmp.lt.s32.totalorder %s215, 0
          %s217 = scalar_select %p216, %s215, 0
          %s218 = smul.u32 4, %s217
          %s220 = ssub.s32 2048, 2048
          %221 = vsyncadd %s211, %s220
          %s222 = smul.addr %s25, 16
          %s223 = sadd.s32 %s218, %s222
          %s224 = smul.addr %s223, 128
          %s225 = scalar_lea.hbm %s0, %s224
          %s226 = sshll.u32 %s214, 4
          %s227 = int_to_ptr.vmem [resolvable:$true] %s226
          %232 = dma.hbm_to_vmem [thread:$0]  %s225, 2048, %s227, %s211, 128, 128, 8
        $region20: #{tpu_custom_call.1} parent=15 // pred_fallthru
          _
        // Predicated region
        $region21: #{tpu_custom_call.1} parent=15 // pred_check
          %p233 = pneg %p98
        $region22: #{tpu_custom_call.1} parent=15 // pred_check_branch
          %235 = sbr.rel (%p233) target = $region24
        $region23: #{tpu_custom_call.1} parent=15 // pred_region
          %s236 = sand.u32 %s88, 1
          %s237 = scalar_lea.sflag [#allocation8], %s236
          %s238 = sand.u32 %s88, 1
          %s239 = smul.addr %s238, 32
          %s240 = scalar_lea.vmem [#allocation7], %s239
          %s241 = sadd.s32 %s24, %s26
          %p242 = scmp.lt.s32.totalorder %s241, 0
          %s243 = scalar_select %p242, %s241, 0
          %s244 = smul.u32 4, %s243
          %s246 = ssub.s32 512, 512
          %247 = vsyncadd %s237, %s246
          %s248 = smul.addr %s25, 4
          %s249 = sadd.s32 %s244, %s248
          %s250 = smul.addr %s249, 128
          %s251 = scalar_lea.hbm %s1, %s250
          %s252 = sshll.u32 %s240, 4
          %s253 = int_to_ptr.vmem [resolvable:$true] %s252
          %258 = dma.hbm_to_vmem [thread:$0]  %s251, 512, %s253, %s237, 128, 128, 8
        $region24: #{tpu_custom_call.1} parent=15 // pred_fallthru
          _
      $region16: #{tpu_custom_call.1} parent=5 // pred_fallthru
        _
      %p259 = scmp.le.s32.totalorder 1, %s17
      %p260 = scmp.lt.s32.totalorder %s17, 3
      %p261 = pnand %p259, %p260
      %p262 = pneg %p261
      // Predicated region
      $region25: #{tpu_custom_call.1} parent=5 // pred_check
        _
      $region26: #{tpu_custom_call.1} parent=5 // pred_check_branch
        %264 = sbr.rel (%p261) target = $region28
      $region27: #{tpu_custom_call.1} parent=5 // pred_region
        %s265 = ssub.s32 %s17, 1
        %s266 = sand.u32 %s57, 1
        %s267 = scalar_lea.sflag [#allocation6], %s266
        %s268 = sand.u32 %s57, 1
        %s269 = smul.addr %s268, 128
        %s270 = scalar_lea.vmem [#allocation5], %s269
        // Predicated region
        $region29: #{tpu_custom_call.1} parent=27 // pred_check
          %p271 = pneg %p70
        $region30: #{tpu_custom_call.1} parent=27 // pred_check_branch
          %273 = sbr.rel (%p271) target = $region32
        $region31: #{tpu_custom_call.1} parent=27 // pred_region
          %274 = dma.done %s267, 2048
        $region32: #{tpu_custom_call.1} parent=27 // pred_fallthru
          _
        %s275 = sand.u32 %s91, 1
        %s276 = scalar_lea.sflag [#allocation8], %s275
        %s277 = sand.u32 %s91, 1
        %s278 = smul.addr %s277, 32
        %s279 = scalar_lea.vmem [#allocation7], %s278
        // Predicated region
        $region33: #{tpu_custom_call.1} parent=27 // pred_check
          %p280 = pneg %p104
        $region34: #{tpu_custom_call.1} parent=27 // pred_check_branch
          %282 = sbr.rel (%p280) target = $region36
        $region35: #{tpu_custom_call.1} parent=27 // pred_region
          %283 = dma.done %s276, 512
        $region36: #{tpu_custom_call.1} parent=27 // pred_fallthru
          _
        %s284 = sand.u32 %s57, 1
        %s285 = scalar_lea.sflag [#allocation6], %s284
        %s286 = sand.u32 %s57, 1
        %s287 = smul.addr %s286, 128
        %s288 = scalar_lea.vmem [#allocation5], %s287
        %p289 = pneg %p70
        %p290 = pneg %p67
        %s291 = sand.u32 %s91, 1
        %s292 = scalar_lea.sflag [#allocation8], %s291
        %s293 = sand.u32 %s91, 1
        %s294 = smul.addr %s293, 32
        %s295 = scalar_lea.vmem [#allocation7], %s294
        %p296 = pneg %p104
        %p297 = pneg %p101
        %p298 = pneg %p132
        %p299 = pneg %p129
        %p300 = scmp.lt.s32.totalorder %s27, 0
        %s301 = scalar_select %p300, %s27, 0
        %p302 = scmp.lt.s32.totalorder %s28, 1
        %s303 = scalar_select %p302, %s28, 1
        %s304 = smul.addr %s301, 2
        %s305 = sadd.s32 %s303, %s304
        %s306 = smul.addr %s305, 4
        %s307 = scalar_lea.vmem %s2, %s306
        %p308 = pneg %p160
        %p309 = pneg %p157
        %p310 = scmp.lt.s32.totalorder %s27, 0
        %s311 = scalar_select %p310, %s27, 0
        %p312 = scmp.lt.s32.totalorder %s28, 1
        %s313 = scalar_select %p312, %s28, 1
        %s314 = smul.addr %s311, 2
        %s315 = sadd.s32 %s313, %s314
        %s316 = smul.addr %s315, 4
        %s317 = scalar_lea.vmem %s3, %s316
        %p318 = pneg %p188
        %p319 = pneg %p185
        %p320 = scmp.lt.s32.totalorder %s27, 0
        %s321 = scalar_select %p320, %s27, 0
        %p322 = scmp.lt.s32.totalorder %s28, 1
        %s323 = scalar_select %p322, %s28, 1
        %s324 = smul.addr %s321, 2
        %s325 = sadd.s32 %s323, %s324
        %s326 = smul.addr %s325, 4
        %s327 = scalar_lea.vmem %s4, %s326
        %s328 = sadd.s32 %s27, %s29
        %p329 = scmp.lt.s32.totalorder %s328, 0
        %s330 = scalar_select %p329, %s328, 0
        %s331 = smul.u32 4, %s330
        %s332 = sadd.s32 %s27, %s29
        %p333 = scmp.lt.s32.totalorder %s332, 0
        %s334 = scalar_select %p333, %s332, 0
        %s335 = smul.u32 4, %s334
        %p336 = scmp.lt.s32.totalorder %s27, 0
        %s337 = scalar_select %p336, %s27, 0
        %p338 = scmp.lt.s32.totalorder %s28, 1
        %s339 = scalar_select %p338, %s28, 1
        %s340 = smul.addr %s337, 2
        %s341 = sadd.s32 %s339, %s340
        %s342 = smul.addr %s341, 4
        %s343 = scalar_lea.vmem %s2, %s342
        %p344 = scmp.lt.s32.totalorder %s27, 0
        %s345 = scalar_select %p344, %s27, 0
        %p346 = scmp.lt.s32.totalorder %s28, 1
        %s347 = scalar_select %p346, %s28, 1
        %s348 = smul.addr %s345, 2
        %s349 = sadd.s32 %s347, %s348
        %s350 = smul.addr %s349, 4
        %s351 = scalar_lea.vmem %s3, %s350
        %p352 = scmp.lt.s32.totalorder %s27, 0
        %s353 = scalar_select %p352, %s27, 0
        %p354 = scmp.lt.s32.totalorder %s28, 1
        %s355 = scalar_select %p354, %s28, 1
        %s356 = smul.addr %s353, 2
        %s357 = sadd.s32 %s355, %s356
        %s358 = smul.addr %s357, 4
        %s359 = scalar_lea.vmem %s4, %s358
        %p360 = scmp.eq.s32.totalorder %s29, 0
        // Predicated region
        $region37: #{tpu_custom_call.1} parent=27 // pred_check
          %p361 = pneg %p360
        $region38: #{tpu_custom_call.1} parent=27 // pred_check_branch
          %363 = sbr.rel (%p361) target = $region40
        $region39: #{tpu_custom_call.1} parent=27 // pred_region
          %364 = vst [vmem:[#allocation2] sm:$0xff] 0.0
          %365 = vst [vmem:[#allocation2 + $0x8] sm:$0xff] 0.0
          %366 = vst [vmem:[#allocation2 + $0x10] sm:$0xff] 0.0
          %367 = vst [vmem:[#allocation2 + $0x18] sm:$0xff] 0.0
          %368 = vst [vmem:[#allocation3] sm:$0xff] 0.0
          %369 = vst [vmem:[#allocation3 + $0x8] sm:$0xff] 0.0
          %370 = vst [vmem:[#allocation3 + $0x10] sm:$0xff] 0.0
          %371 = vst [vmem:[#allocation3 + $0x18] sm:$0xff] 0.0
          %372 = vst [vmem:[#allocation4] sm:$0xff] 0.0
          %373 = vst [vmem:[#allocation4 + $0x8] sm:$0xff] 0.0
          %374 = vst [vmem:[#allocation4 + $0x10] sm:$0xff] 0.0
          %375 = vst [vmem:[#allocation4 + $0x18] sm:$0xff] 0.0
        $region40: #{tpu_custom_call.1} parent=27 // pred_fallthru
          _
        %v376 = vld [vmem:[%s279] sm:$0xff]
        %v377 = vld [vmem:[%s279 + $0x8] sm:$0xff]
        %v378 = vld [vmem:[%s279 + $0x10] sm:$0xff]
        %v379 = vld [vmem:[%s279 + $0x18] sm:$0xff]
        %v380 = vld [vmem:[%s270] sm:$0xff]
        %v381 = vld [vmem:[%s270 + $0x8] sm:$0xff]
        %v382 = vld [vmem:[%s270 + $0x10] sm:$0xff]
        %v383 = vld [vmem:[%s270 + $0x18] sm:$0xff]
        %vm384 = vcmp.eq.s32.totalorder %v376, 0
        %vm385 = vcmp.eq.s32.totalorder %v377, 0
        %vm386 = vcmp.eq.s32.totalorder %v378, 0
        %vm387 = vcmp.eq.s32.totalorder %v379, 0
        %v388 = vld [vmem:[#allocation2] sm:$0xff]
        %v389 = vsel %vm384, %v380, 0.0
        %v390 = vsel %vm385, %v381, 0.0
        %v391 = vsel %vm386, %v382, 0.0
        %v392 = vsel %vm387, %v383, 0.0
        %v393 = vadd.f32 %v389, %v390
        %v394 = vadd.f32 %v393, %v391
        %v395 = vadd.f32 %v394, %v392
        %v396 = vadd.f32 %v388, %v395
        %397 = vst [vmem:[#allocation2] sm:$0xff] %v396
        %v398 = vld [vmem:[#allocation3] sm:$0xff]
        %v399 = vadd.f32 %v380, %v381
        %v400 = vadd.f32 %v399, %v382
        %v401 = vadd.f32 %v400, %v383
        %v402 = vadd.f32 %v398, %v401
        %403 = vst [vmem:[#allocation3] sm:$0xff] %v402
        %v404 = vld [vmem:[#allocation4] sm:$0xff]
        %v405 = vsel %vm384, 1, 0
        %v406 = vsel %vm385, 1, 0
        %v407 = vsel %vm386, 1, 0
        %v408 = vsel %vm387, 1, 0
        %v409 = vcvt.s32.f32 %v405
        %v410 = vcvt.s32.f32 %v406
        %v411 = vcvt.s32.f32 %v407
        %v412 = vcvt.s32.f32 %v408
        %v413 = vadd.f32 %v409, %v410
        %v414 = vadd.f32 %v413, %v411
        %v415 = vadd.f32 %v414, %v412
        %v416 = vadd.f32 %v404, %v415
        %417 = vst [vmem:[#allocation4] sm:$0xff] %v416
        %s418 = scalar_lea.vmem %s270, 32 [#allocation5]
        %v419 = vld [vmem:[%s418] sm:$0xff]
        %v420 = vld [vmem:[%s418 + $0x8] sm:$0xff]
        %v421 = vld [vmem:[%s418 + $0x10] sm:$0xff]
        %v422 = vld [vmem:[%s418 + $0x18] sm:$0xff]
        %vm423 = vcmp.eq.s32.totalorder %v376, 1
        %vm424 = vcmp.eq.s32.totalorder %v377, 1
        %vm425 = vcmp.eq.s32.totalorder %v378, 1
        %vm426 = vcmp.eq.s32.totalorder %v379, 1
        %s427 = scalar_lea.vmem [#allocation2], 8
        %v428 = vld [vmem:[%s427] sm:$0xff]
        %v429 = vsel %vm423, %v419, 0.0
        %v430 = vsel %vm424, %v420, 0.0
        %v431 = vsel %vm425, %v421, 0.0
        %v432 = vsel %vm426, %v422, 0.0
        %v433 = vadd.f32 %v429, %v430
        %v434 = vadd.f32 %v433, %v431
        %v435 = vadd.f32 %v434, %v432
        %v436 = vadd.f32 %v428, %v435
        %437 = vst [vmem:[%s427] sm:$0xff] %v436
        %s438 = scalar_lea.vmem [#allocation3], 8
        %v439 = vld [vmem:[%s438] sm:$0xff]
        %v440 = vadd.f32 %v419, %v420
        %v441 = vadd.f32 %v440, %v421
        %v442 = vadd.f32 %v441, %v422
        %v443 = vadd.f32 %v439, %v442
        %444 = vst [vmem:[%s438] sm:$0xff] %v443
        %s445 = scalar_lea.vmem [#allocation4], 8
        %v446 = vld [vmem:[%s445] sm:$0xff]
        %v447 = vsel %vm423, 1, 0
        %v448 = vsel %vm424, 1, 0
        %v449 = vsel %vm425, 1, 0
        %v450 = vsel %vm426, 1, 0
        %v451 = vcvt.s32.f32 %v447
        %v452 = vcvt.s32.f32 %v448
        %v453 = vcvt.s32.f32 %v449
        %v454 = vcvt.s32.f32 %v450
        %v455 = vadd.f32 %v451, %v452
        %v456 = vadd.f32 %v455, %v453
        %v457 = vadd.f32 %v456, %v454
        %v458 = vadd.f32 %v446, %v457
        %459 = vst [vmem:[%s445] sm:$0xff] %v458
        %s460 = scalar_lea.vmem %s270, 64 [#allocation5]
        %v461 = vld [vmem:[%s460] sm:$0xff]
        %v462 = vld [vmem:[%s460 + $0x8] sm:$0xff]
        %v463 = vld [vmem:[%s460 + $0x10] sm:$0xff]
        %v464 = vld [vmem:[%s460 + $0x18] sm:$0xff]
        %vm465 = vcmp.eq.s32.totalorder %v376, 2
        %vm466 = vcmp.eq.s32.totalorder %v377, 2
        %vm467 = vcmp.eq.s32.totalorder %v378, 2
        %vm468 = vcmp.eq.s32.totalorder %v379, 2
        %s469 = scalar_lea.vmem [#allocation2], 16
        %v470 = vld [vmem:[%s469] sm:$0xff]
        %v471 = vsel %vm465, %v461, 0.0
        %v472 = vsel %vm466, %v462, 0.0
        %v473 = vsel %vm467, %v463, 0.0
        %v474 = vsel %vm468, %v464, 0.0
        %v475 = vadd.f32 %v471, %v472
        %v476 = vadd.f32 %v475, %v473
        %v477 = vadd.f32 %v476, %v474
        %v478 = vadd.f32 %v470, %v477
        %479 = vst [vmem:[%s469] sm:$0xff] %v478
        %s480 = scalar_lea.vmem [#allocation3], 16
        %v481 = vld [vmem:[%s480] sm:$0xff]
        %v482 = vadd.f32 %v461, %v462
        %v483 = vadd.f32 %v482, %v463
        %v484 = vadd.f32 %v483, %v464
        %v485 = vadd.f32 %v481, %v484
        %486 = vst [vmem:[%s480] sm:$0xff] %v485
        %s487 = scalar_lea.vmem [#allocation4], 16
        %v488 = vld [vmem:[%s487] sm:$0xff]
        %v489 = vsel %vm465, 1, 0
        %v490 = vsel %vm466, 1, 0
        %v491 = vsel %vm467, 1, 0
        %v492 = vsel %vm468, 1, 0
        %v493 = vcvt.s32.f32 %v489
        %v494 = vcvt.s32.f32 %v490
        %v495 = vcvt.s32.f32 %v491
        %v496 = vcvt.s32.f32 %v492
        %v497 = vadd.f32 %v493, %v494
        %v498 = vadd.f32 %v497, %v495
        %v499 = vadd.f32 %v498, %v496
        %v500 = vadd.f32 %v488, %v499
        %501 = vst [vmem:[%s487] sm:$0xff] %v500
        %s502 = scalar_lea.vmem %s270, 96 [#allocation5]
        %v503 = vld [vmem:[%s502] sm:$0xff]
        %v504 = vld [vmem:[%s502 + $0x8] sm:$0xff]
        %v505 = vld [vmem:[%s502 + $0x10] sm:$0xff]
        %v506 = vld [vmem:[%s502 + $0x18] sm:$0xff]
        %vm507 = vcmp.eq.s32.totalorder %v376, 3
        %vm508 = vcmp.eq.s32.totalorder %v377, 3
        %vm509 = vcmp.eq.s32.totalorder %v378, 3
        %vm510 = vcmp.eq.s32.totalorder %v379, 3
        %s511 = scalar_lea.vmem [#allocation2], 24
        %v512 = vld [vmem:[%s511] sm:$0xff]
        %v513 = vsel %vm507, %v503, 0.0
        %v514 = vsel %vm508, %v504, 0.0
        %v515 = vsel %vm509, %v505, 0.0
        %v516 = vsel %vm510, %v506, 0.0
        %v517 = vadd.f32 %v513, %v514
        %v518 = vadd.f32 %v517, %v515
        %v519 = vadd.f32 %v518, %v516
        %v520 = vadd.f32 %v512, %v519
        %521 = vst [vmem:[%s511] sm:$0xff] %v520
        %s522 = scalar_lea.vmem [#allocation3], 24
        %v523 = vld [vmem:[%s522] sm:$0xff]
        %v524 = vadd.f32 %v503, %v504
        %v525 = vadd.f32 %v524, %v505
        %v526 = vadd.f32 %v525, %v506
        %v527 = vadd.f32 %v523, %v526
        %528 = vst [vmem:[%s522] sm:$0xff] %v527
        %s529 = scalar_lea.vmem [#allocation4], 24
        %v530 = vld [vmem:[%s529] sm:$0xff]
        %v531 = vsel %vm507, 1, 0
        %v532 = vsel %vm508, 1, 0
        %v533 = vsel %vm509, 1, 0
        %v534 = vsel %vm510, 1, 0
        %v535 = vcvt.s32.f32 %v531
        %v536 = vcvt.s32.f32 %v532
        %v537 = vcvt.s32.f32 %v533
        %v538 = vcvt.s32.f32 %v534
        %v539 = vadd.f32 %v535, %v536
        %v540 = vadd.f32 %v539, %v537
        %v541 = vadd.f32 %v540, %v538
        %v542 = vadd.f32 %v530, %v541
        %543 = vst [vmem:[%s529] sm:$0xff] %v542
        // Predicated region
        $region41: #{tpu_custom_call.1} parent=27 // pred_check
          %p544 = pneg %p360
        $region42: #{tpu_custom_call.1} parent=27 // pred_check_branch
          %546 = sbr.rel (%p544) target = $region44
        $region43: #{tpu_custom_call.1} parent=27 // pred_region
          %v547 = vld [vmem:[#allocation2] sm:$0xff]
          %v548 = vld [vmem:[#allocation2 + $0x8] sm:$0xff]
          %v549 = vld [vmem:[#allocation2 + $0x10] sm:$0xff]
          %v550 = vld [vmem:[#allocation2 + $0x18] sm:$0xff]
          %551 = vadd.xlane.f32.xlu0 %v547
          %v552 = vpop.xlane.xlu0 %551
          %553 = vadd.xlane.f32.xlu0 %v548
          %v554 = vpop.xlane.xlu0 %553
          %555 = vadd.xlane.f32.xlu0 %v549
          %v556 = vpop.xlane.xlu0 %555
          %557 = vadd.xlane.f32.xlu0 %v550
          %v558 = vpop.xlane.xlu0 %557
          %v563 = vlaneseq
          %v564 = vand.u32 %v563, 127
          %v565 = vlaneseq
          %v566 = vshrl.u32 %v565, 7
          %v567 = vsub.s32 %v564, %v566
          %v568 = vrot.slane %v552, %v567
          %v569 = vlaneseq
          %v570 = vshrl.u32 %v569, 7
          %v571 = vsub.s32 %v564, %v570
          %v572 = vrot.slane %v554, %v571
          %v573 = vlaneseq
          %v574 = vshrl.u32 %v573, 7
          %v575 = vsub.s32 %v564, %v574
          %v576 = vrot.slane %v556, %v575
          %v577 = vlaneseq
          %v578 = vshrl.u32 %v577, 7
          %v579 = vsub.s32 %v564, %v578
          %v580 = vrot.slane %v558, %v579
          %vm581 = vcmask 1041409
          %v582 = vsel %vm581, %v572, %v568
          %vm583 = vcmask 1042434
          %v584 = vsel %vm583, %v576, %v582
          %vm585 = vcmask 1043459
          %v586 = vsel %vm585, %v580, %v584
          %vm588 = vcmask 60416
          %v589 = vsel %vm588, %v586, 0.0
          %590 = vadd.xlane.f32.xlu0 %v589
          %v591 = vpop.xlane.xlu0 %590
          %v592 = vld [vmem:[#allocation3] sm:$0xff]
          %v593 = vld [vmem:[#allocation3 + $0x8] sm:$0xff]
          %v594 = vld [vmem:[#allocation3 + $0x10] sm:$0xff]
          %v595 = vld [vmem:[#allocation3 + $0x18] sm:$0xff]
          %596 = vadd.xlane.f32.xlu0 %v592
          %v597 = vpop.xlane.xlu0 %596
          %598 = vadd.xlane.f32.xlu0 %v593
          %v599 = vpop.xlane.xlu0 %598
          %600 = vadd.xlane.f32.xlu0 %v594
          %v601 = vpop.xlane.xlu0 %600
          %602 = vadd.xlane.f32.xlu0 %v595
          %v603 = vpop.xlane.xlu0 %602
          %v608 = vlaneseq
          %v609 = vshrl.u32 %v608, 7
          %v610 = vsub.s32 %v564, %v609
          %v611 = vrot.slane %v597, %v610
          %v612 = vlaneseq
          %v613 = vshrl.u32 %v612, 7
          %v614 = vsub.s32 %v564, %v613
          %v615 = vrot.slane %v599, %v614
          %v616 = vlaneseq
          %v617 = vshrl.u32 %v616, 7
          %v618 = vsub.s32 %v564, %v617
          %v619 = vrot.slane %v601, %v618
          %v620 = vlaneseq
          %v621 = vshrl.u32 %v620, 7
          %v622 = vsub.s32 %v564, %v621
          %v623 = vrot.slane %v603, %v622
          %v624 = vsel %vm581, %v615, %v611
          %v625 = vsel %vm583, %v619, %v624
          %v626 = vsel %vm585, %v623, %v625
          %v628 = vsel %vm588, %v626, 0.0
          %629 = vadd.xlane.f32.xlu0 %v628
          %v630 = vpop.xlane.xlu0 %629
          %v631 = vld [vmem:[#allocation4] sm:$0xff]
          %v632 = vld [vmem:[#allocation4 + $0x8] sm:$0xff]
          %v633 = vld [vmem:[#allocation4 + $0x10] sm:$0xff]
          %v634 = vld [vmem:[#allocation4 + $0x18] sm:$0xff]
          %635 = vadd.xlane.f32.xlu0 %v631
          %v636 = vpop.xlane.xlu0 %635
          %637 = vadd.xlane.f32.xlu0 %v632
          %v638 = vpop.xlane.xlu0 %637
          %639 = vadd.xlane.f32.xlu0 %v633
          %v640 = vpop.xlane.xlu0 %639
          %641 = vadd.xlane.f32.xlu0 %v634
          %v642 = vpop.xlane.xlu0 %641
          %v647 = vlaneseq
          %v648 = vshrl.u32 %v647, 7
          %v649 = vsub.s32 %v564, %v648
          %v650 = vrot.slane %v636, %v649
          %v651 = vlaneseq
          %v652 = vshrl.u32 %v651, 7
          %v653 = vsub.s32 %v564, %v652
          %v654 = vrot.slane %v638, %v653
          %v655 = vlaneseq
          %v656 = vshrl.u32 %v655, 7
          %v657 = vsub.s32 %v564, %v656
          %v658 = vrot.slane %v640, %v657
          %v659 = vlaneseq
          %v660 = vshrl.u32 %v659, 7
          %v661 = vsub.s32 %v564, %v660
          %v662 = vrot.slane %v642, %v661
          %v663 = vsel %vm581, %v654, %v650
          %v664 = vsel %vm583, %v658, %v663
          %v665 = vsel %vm585, %v662, %v664
          %v667 = vsel %vm588, %v665, 0.0
          %668 = vadd.xlane.f32.xlu0 %v667
          %v669 = vpop.xlane.xlu0 %668
          %vm670 = vcmask 3072
          %671 = vst.msk [vmem:[%s343] sm:$0xf] %vm670, %v591
          %v672 = vsub.f32 %v630, %v591
          %673 = vst.msk [vmem:[%s351] sm:$0xf] %vm670, %v672
          %v674 = vsub.f32 %v669, %v591
          %675 = vst.msk [vmem:[%s359] sm:$0xf] %vm670, %v674
        $region44: #{tpu_custom_call.1} parent=27 // pred_fallthru
          _
        %p676 = scmp.lt.s32.totalorder %s27, 0
        %s677 = scalar_select %p676, %s27, 0
        %p678 = scmp.lt.s32.totalorder %s28, 1
        %s679 = scalar_select %p678, %s28, 1
        %s680 = smul.addr %s677, 2
        %s681 = sadd.s32 %s679, %s680
        %s682 = smul.addr %s681, 4
        %s683 = scalar_lea.vmem %s2, %s682
        %p684 = scmp.lt.s32.totalorder %s27, 0
        %s685 = scalar_select %p684, %s27, 0
        %p686 = scmp.lt.s32.totalorder %s28, 1
        %s687 = scalar_select %p686, %s28, 1
        %s688 = smul.addr %s685, 2
        %s689 = sadd.s32 %s687, %s688
        %s690 = smul.addr %s689, 4
        %s691 = scalar_lea.vmem %s3, %s690
        %p692 = scmp.lt.s32.totalorder %s27, 0
        %s693 = scalar_select %p692, %s27, 0
        %p694 = scmp.lt.s32.totalorder %s28, 1
        %s695 = scalar_select %p694, %s28, 1
        %s696 = smul.addr %s693, 2
        %s697 = sadd.s32 %s695, %s696
        %s698 = smul.addr %s697, 4
        %s699 = scalar_lea.vmem %s4, %s698
        // Predicated region
        $region45: #{tpu_custom_call.1} parent=27 // pred_check
          %p700 = pneg %p129
        $region46: #{tpu_custom_call.1} parent=27 // pred_check_branch
          %702 = sbr.rel (%p700) target = $region48
        $region47: #{tpu_custom_call.1} parent=27 // pred_region
          _
        $region48: #{tpu_custom_call.1} parent=27 // pred_fallthru
          _
        // Predicated region
        $region49: #{tpu_custom_call.1} parent=27 // pred_check
          %p703 = pneg %p157
        $region50: #{tpu_custom_call.1} parent=27 // pred_check_branch
          %705 = sbr.rel (%p703) target = $region52
        $region51: #{tpu_custom_call.1} parent=27 // pred_region
          _
        $region52: #{tpu_custom_call.1} parent=27 // pred_fallthru
          _
        // Predicated region
        $region53: #{tpu_custom_call.1} parent=27 // pred_check
          %p706 = pneg %p185
        $region54: #{tpu_custom_call.1} parent=27 // pred_check_branch
          %708 = sbr.rel (%p706) target = $region56
        $region55: #{tpu_custom_call.1} parent=27 // pred_region
          _
        $region56: #{tpu_custom_call.1} parent=27 // pred_fallthru
          _
      $region28: #{tpu_custom_call.1} parent=5 // pred_fallthru
        _
      %p709 = scmp.le.s32.totalorder 2, %s17
      // Predicated region
      $region57: #{tpu_custom_call.1} parent=5 // pred_check
        %p710 = pneg %p709
      $region58: #{tpu_custom_call.1} parent=5 // pred_check_branch
        %712 = sbr.rel (%p710) target = $region60
      $region59: #{tpu_custom_call.1} parent=5 // pred_region
        %s713 = ssub.s32 %s17, 2
        // Predicated region
        $region61: #{tpu_custom_call.1} parent=59 // pred_check
          %p714 = pneg %p135
        $region62: #{tpu_custom_call.1} parent=59 // pred_check_branch
          %716 = sbr.rel (%p714) target = $region64
        $region63: #{tpu_custom_call.1} parent=59 // pred_region
          %p717 = scmp.lt.s32.totalorder %s30, 0
          %s718 = scalar_select %p717, %s30, 0
          %p719 = scmp.lt.s32.totalorder %s31, 1
          %s720 = scalar_select %p719, %s31, 1
          %s721 = smul.addr %s718, 2
          %s722 = sadd.s32 %s720, %s721
          %s723 = smul.addr %s722, 4
          %s724 = scalar_lea.vmem %s2, %s723
        $region64: #{tpu_custom_call.1} parent=59 // pred_fallthru
          _
        // Predicated region
        $region65: #{tpu_custom_call.1} parent=59 // pred_check
          %p725 = pneg %p163
        $region66: #{tpu_custom_call.1} parent=59 // pred_check_branch
          %727 = sbr.rel (%p725) target = $region68
        $region67: #{tpu_custom_call.1} parent=59 // pred_region
          %p728 = scmp.lt.s32.totalorder %s30, 0
          %s729 = scalar_select %p728, %s30, 0
          %p730 = scmp.lt.s32.totalorder %s31, 1
          %s731 = scalar_select %p730, %s31, 1
          %s732 = smul.addr %s729, 2
          %s733 = sadd.s32 %s731, %s732
          %s734 = smul.addr %s733, 4
          %s735 = scalar_lea.vmem %s3, %s734
        $region68: #{tpu_custom_call.1} parent=59 // pred_fallthru
          _
        // Predicated region
        $region69: #{tpu_custom_call.1} parent=59 // pred_check
          %p736 = pneg %p191
        $region70: #{tpu_custom_call.1} parent=59 // pred_check_branch
          %738 = sbr.rel (%p736) target = $region72
        $region71: #{tpu_custom_call.1} parent=59 // pred_region
          %p739 = scmp.lt.s32.totalorder %s30, 0
          %s740 = scalar_select %p739, %s30, 0
          %p741 = scmp.lt.s32.totalorder %s31, 1
          %s742 = scalar_select %p741, %s31, 1
          %s743 = smul.addr %s740, 2
          %s744 = sadd.s32 %s742, %s743
          %s745 = smul.addr %s744, 4
          %s746 = scalar_lea.vmem %s4, %s745
        $region72: #{tpu_custom_call.1} parent=59 // pred_fallthru
          _
      $region60: #{tpu_custom_call.1} parent=5 // pred_fallthru
        _
    $region6: #{tpu_custom_call.1} parent=1 // loop_footer
      %s21 = sadd.s32 1, %s17
    $region7: #{tpu_custom_call.1} parent=1 // loop_footer_branch
      %16 = sbr.rel target = $region3
    $region8: #{tpu_custom_call.1} parent=1 // loop_exit
      _
    %747 = vsyncpa [#allocation6], 1
    %s748 = scalar_lea.sflag [#allocation6], 1
    %749 = vsyncpa %s748, 1
    %750 = vsyncpa [#allocation8], 1
    %s751 = scalar_lea.sflag [#allocation8], 1
    %752 = vsyncpa %s751, 1

</llo_original>
